<compile_context>
chip_gen: v7x
topology: tpu7x:2x2x1
jax: 0.10.0
libtpu: 0.0.40
codegen_flags: <defaults>
</compile_context>

<pallas_src>
import jax
import jax.numpy as jnp
from jax.experimental import pallas as pl
from jax.experimental.pallas import tpu as pltpu


def _net_kernel(x_ref, y_ref,
                sw1, sb1, sw2, sb2, sw3, sb3,
                aw1, ab1, aw2, ab2,
                cwh, cwg, cb,
                out_ref):
    f32 = jnp.float32
    bf16 = jnp.bfloat16

    # In-kernel narrowing cast: free on the VPU under the memory roofline and
    # keeps HBM traffic at a single f32 read of x/y (no wrapper convert pass).
    x = x_ref[...].astype(bf16)
    y = y_ref[...].astype(bf16)

    def dense_relu(a, w_ref, b_ref):
        # bf16 x bf16 -> f32 accumulate on the MXU; bias + ReLU in f32 (VPU),
        # then narrow back to bf16 so the next dot stays on the bf16 MXU path.
        acc = jnp.dot(a, w_ref[...], preferred_element_type=f32) + b_ref[...]
        return jnp.maximum(acc, 0.0).astype(bf16)

    # State branch: (in -> 128) -> ReLU -> (128 -> 64) -> ReLU -> (64 -> 16) -> ReLU
    h = dense_relu(x, sw1, sb1)
    h = dense_relu(h, sw2, sb2)
    h = dense_relu(h, sw3, sb3)

    # Arrival branch: (in -> 64) -> ReLU -> (64 -> 16) -> ReLU
    g = dense_relu(y, aw1, ab1)
    g = dense_relu(g, aw2, ab2)

    # Combined Linear(32, 1): concat([h, g]) @ cw == h @ cw[:16] + g @ cw[16:]
    # (split in the wrapper, avoiding an XLU lane-concat of sub-128-lane tiles).
    logit = (jnp.dot(h, cwh[...], preferred_element_type=f32)
             + jnp.dot(g, cwg[...], preferred_element_type=f32)
             + cb[...])

    # sigmoid(x) = 1 / (1 + exp(-x)); exp and approx reciprocal ride the EUP
    # slot, keeping the epilogue off the VPU critical path.
    out_ref[...] = pl.reciprocal(1.0 + jnp.exp(-logit), approx=True)


def _round_up(a, m):
    return -(-a // m) * m


def net_forward(x, y, params, *, tb=2048):
    """x: [B, state_size], y: [B, arrival_size] (f32). Returns [B, 1] f32 sigmoid."""
    B, state_size = x.shape
    _, arrival_size = y.shape

    # Tile selection: big tiles (default 2048 rows) amortize the ~0.35 us
    # per-grid-step overhead; for large batches always use >= 2 tiles so both
    # v7x TensorCores get work; never jnp.pad the inputs (the boundary DMA of
    # the ragged tail is clamped by Pallas and the oversized output is sliced).
    num_tiles = max(1, -(-B // tb))
    if num_tiles == 1 and B > 1024:
        num_tiles = 2
    tb_eff = _round_up(-(-B // num_tiles), 8)
    num_tiles = -(-B // tb_eff)
    b_pad = num_tiles * tb_eff

    bf = lambda w: w.astype(jnp.bfloat16)
    cw = params["cw"]
    weights = [
        bf(params["sw1"]), params["sb1"],
        bf(params["sw2"]), params["sb2"],
        bf(params["sw3"]), params["sb3"],
        bf(params["aw1"]), params["ab1"],
        bf(params["aw2"]), params["ab2"],
        bf(cw[:16]), bf(cw[16:]), params["cb"],
    ]

    def batch_spec(feat):
        return pl.BlockSpec((tb_eff, feat), lambda i: (i, 0))

    def resident_spec(a):
        # Constant block index across the grid -> DMA'd once, stays in VMEM.
        # (pl.Buffered(1) would save ~60 KB of double-buffer VMEM; skipped as
        # the headroom is not needed at this tile size.)
        return pl.BlockSpec(a.shape, lambda i: (0, 0))

    out = pl.pallas_call(
        _net_kernel,
        out_shape=jax.ShapeDtypeStruct((b_pad, 1), jnp.float32),
        grid=(num_tiles,),
        in_specs=[batch_spec(state_size), batch_spec(arrival_size)]
                 + [resident_spec(a) for a in weights],
        out_specs=pl.BlockSpec((tb_eff, 1), lambda i: (i, 0)),
        compiler_params=pltpu.CompilerParams(
            # Independent batch tiles -> shard across v7x's 2 TensorCores;
            # harmless no-op on v5e/v6e. 32 MiB scoped VMEM comfortably covers
            # the double-buffered f32 input tiles + f32 intermediates (raises
            # v5e's 16 MiB default, stays well under v7x's 64 MiB physical).
            dimension_semantics=("parallel",),
            vmem_limit_bytes=32 * 1024 * 1024),
    )(x, y, *weights)
    return out[:B]


def init_params(key, state_size, arrival_size):
    """Deterministic synthetic init. Weights stored transposed: [in, out].
    Biases stored as [1, out] for clean in-kernel broadcasting."""
    dims = {
        "s1": (state_size, 128), "s2": (128, 64), "s3": (64, 16),
        "a1": (arrival_size, 64), "a2": (64, 16),
        "c1": (32, 1),
    }
    keys = jax.random.split(key, len(dims))
    params = {}
    names = [("sw1", "sb1", "s1"), ("sw2", "sb2", "s2"), ("sw3", "sb3", "s3"),
             ("aw1", "ab1", "a1"), ("aw2", "ab2", "a2"), ("cw", "cb", "c1")]
    for k, (wn, bn, dn) in zip(keys, names):
        fan_in, fan_out = dims[dn]
        bound = 1.0 / jnp.sqrt(fan_in)
        kw, kb = jax.random.split(k)
        params[wn] = jax.random.uniform(
            kw, (fan_in, fan_out), jnp.float32, -bound, bound)
        params[bn] = jax.random.uniform(
            kb, (1, fan_out), jnp.float32, -bound, bound)
    return params


def reference_forward(x, y, p):
    """Pure-JAX reference mirroring the kernel's bf16-operand / f32-accumulate dots."""
    bf16 = jnp.bfloat16

    def dense(a, w, b):
        return jnp.dot(a.astype(bf16), w.astype(bf16),
                       preferred_element_type=jnp.float32) + b

    relu = lambda v: jnp.maximum(v, 0.0)
    h = relu(dense(x, p["sw1"], p["sb1"]))
    h = relu(dense(h, p["sw2"], p["sb2"]))
    h = relu(dense(h, p["sw3"], p["sb3"]))
    g = relu(dense(y, p["aw1"], p["ab1"]))
    g = relu(dense(g, p["aw2"], p["ab2"]))
    z = jnp.concatenate([h, g], axis=1)
    return jax.nn.sigmoid(dense(z, p["cw"], p["cb"]))


if __name__ == "__main__":
    state_size, arrival_size, batch = 32, 8, 8
    key = jax.random.PRNGKey(0)
    kx, ky, kp = jax.random.split(key, 3)
    x = jax.random.normal(kx, (batch, state_size), jnp.float32)
    y = jax.random.normal(ky, (batch, arrival_size), jnp.float32)
    params = init_params(kp, state_size, arrival_size)

    out = net_forward(x, y, params)
    out = jax.block_until_ready(out)

    ref = reference_forward(x, y, params)
    assert out.shape == (batch, 1), out.shape
    assert jnp.allclose(out, ref, atol=5e-3, rtol=0.0), (out, ref)
    print("KERNEL_OK")
</pallas_src>

<mosaic_0001>
module attributes {stable_mosaic.version = 11 : i64} {
  func.func @_net_kernel(%arg0: i32, %arg1: memref<8x32xf32, #tpu.memory_space<vmem>>, %arg2: memref<8x8xf32, #tpu.memory_space<vmem>>, %arg3: memref<32x128xbf16, #tpu.memory_space<vmem>>, %arg4: memref<1x128xf32, #tpu.memory_space<vmem>>, %arg5: memref<128x64xbf16, #tpu.memory_space<vmem>>, %arg6: memref<1x64xf32, #tpu.memory_space<vmem>>, %arg7: memref<64x16xbf16, #tpu.memory_space<vmem>>, %arg8: memref<1x16xf32, #tpu.memory_space<vmem>>, %arg9: memref<8x64xbf16, #tpu.memory_space<vmem>>, %arg10: memref<1x64xf32, #tpu.memory_space<vmem>>, %arg11: memref<64x16xbf16, #tpu.memory_space<vmem>>, %arg12: memref<1x16xf32, #tpu.memory_space<vmem>>, %arg13: memref<16x1xbf16, #tpu.memory_space<vmem>>, %arg14: memref<16x1xbf16, #tpu.memory_space<vmem>>, %arg15: memref<1x1xf32, #tpu.memory_space<vmem>>, %arg16: memref<8x1xf32, #tpu.memory_space<vmem>>) attributes {dimension_semantics = [#tpu.dimension_semantics<parallel>], iteration_bounds = array<i64: 1>, scalar_prefetch = 0 : i64, scratch_operands = 0 : i64, tpu.core_type = #tpu.core_type<tc>, window_params = [{transform_indices = @transform_0, window_bounds = array<i64: 8, 32>}, {transform_indices = @transform_1, window_bounds = array<i64: 8, 8>}, {pipeline_mode = #tpu.pipeline_mode<synchronous>, transform_indices = @transform_2, window_bounds = array<i64: 32, 128>}, {pipeline_mode = #tpu.pipeline_mode<synchronous>, transform_indices = @transform_3, window_bounds = array<i64: 1, 128>}, {pipeline_mode = #tpu.pipeline_mode<synchronous>, transform_indices = @transform_4, window_bounds = array<i64: 128, 64>}, {pipeline_mode = #tpu.pipeline_mode<synchronous>, transform_indices = @transform_5, window_bounds = array<i64: 1, 64>}, {pipeline_mode = #tpu.pipeline_mode<synchronous>, transform_indices = @transform_6, window_bounds = array<i64: 64, 16>}, {pipeline_mode = #tpu.pipeline_mode<synchronous>, transform_indices = @transform_7, window_bounds = array<i64: 1, 16>}, {pipeline_mode = #tpu.pipeline_mode<synchronous>, transform_indices = @transform_8, window_bounds = array<i64: 8, 64>}, {pipeline_mode = #tpu.pipeline_mode<synchronous>, transform_indices = @transform_9, window_bounds = array<i64: 1, 64>}, {pipeline_mode = #tpu.pipeline_mode<synchronous>, transform_indices = @transform_10, window_bounds = array<i64: 64, 16>}, {pipeline_mode = #tpu.pipeline_mode<synchronous>, transform_indices = @transform_11, window_bounds = array<i64: 1, 16>}, {pipeline_mode = #tpu.pipeline_mode<synchronous>, transform_indices = @transform_12, window_bounds = array<i64: 16, 1>}, {pipeline_mode = #tpu.pipeline_mode<synchronous>, transform_indices = @transform_13, window_bounds = array<i64: 16, 1>}, {pipeline_mode = #tpu.pipeline_mode<synchronous>, transform_indices = @transform_14, window_bounds = array<i64: 1, 1>}, {transform_indices = @transform_15, window_bounds = array<i64: 8, 1>}]} {
    %c0 = arith.constant 0 : index
    %c0_0 = arith.constant 0 : index
    %0 = vector.load %arg1[%c0, %c0_0] : memref<8x32xf32, #tpu.memory_space<vmem>>, vector<8x32xf32>
    %1 = arith.truncf %0 : vector<8x32xf32> to vector<8x32xbf16>
    %c0_1 = arith.constant 0 : index
    %c0_2 = arith.constant 0 : index
    %2 = vector.load %arg2[%c0_1, %c0_2] : memref<8x8xf32, #tpu.memory_space<vmem>>, vector<8x8xf32>
    %3 = arith.truncf %2 : vector<8x8xf32> to vector<8x8xbf16>
    %c0_3 = arith.constant 0 : index
    %c0_4 = arith.constant 0 : index
    %4 = vector.load %arg3[%c0_3, %c0_4] : memref<32x128xbf16, #tpu.memory_space<vmem>>, vector<32x128xbf16>
    %cst = arith.constant dense<0.000000e+00> : vector<8x128xf32>
    %5 = tpu.matmul %1, %4, %cst {dimension_numbers = #tpu.dot_dimension_numbers<[1], [0], [0], [1], [0, 0, 1, 1], [], []>} : vector<8x32xbf16>, vector<32x128xbf16>, vector<8x128xf32> -> vector<8x128xf32>
    %c0_5 = arith.constant 0 : index
    %c0_6 = arith.constant 0 : index
    %6 = vector.load %arg4[%c0_5, %c0_6] : memref<1x128xf32, #tpu.memory_space<vmem>>, vector<1x128xf32>
    %7 = vector.broadcast %6 : vector<1x128xf32> to vector<8x128xf32>
    %8 = arith.addf %5, %7 : vector<8x128xf32>
    %cst_7 = arith.constant 0.000000e+00 : f32
    %9 = vector.broadcast %cst_7 : f32 to vector<8x128xf32>
    %10 = arith.maximumf %8, %9 : vector<8x128xf32>
    %11 = arith.truncf %10 : vector<8x128xf32> to vector<8x128xbf16>
    %c0_8 = arith.constant 0 : index
    %c0_9 = arith.constant 0 : index
    %12 = vector.load %arg5[%c0_8, %c0_9] : memref<128x64xbf16, #tpu.memory_space<vmem>>, vector<128x64xbf16>
    %cst_10 = arith.constant dense<0.000000e+00> : vector<8x64xf32>
    %13 = tpu.matmul %11, %12, %cst_10 {dimension_numbers = #tpu.dot_dimension_numbers<[1], [0], [0], [1], [0, 0, 1, 1], [], []>} : vector<8x128xbf16>, vector<128x64xbf16>, vector<8x64xf32> -> vector<8x64xf32>
    %c0_11 = arith.constant 0 : index
    %c0_12 = arith.constant 0 : index
    %14 = vector.load %arg6[%c0_11, %c0_12] : memref<1x64xf32, #tpu.memory_space<vmem>>, vector<1x64xf32>
    %15 = vector.broadcast %14 : vector<1x64xf32> to vector<8x64xf32>
    %16 = arith.addf %13, %15 : vector<8x64xf32>
    %cst_13 = arith.constant 0.000000e+00 : f32
    %17 = vector.broadcast %cst_13 : f32 to vector<8x64xf32>
    %18 = arith.maximumf %16, %17 : vector<8x64xf32>
    %19 = arith.truncf %18 : vector<8x64xf32> to vector<8x64xbf16>
    %c0_14 = arith.constant 0 : index
    %c0_15 = arith.constant 0 : index
    %20 = vector.load %arg7[%c0_14, %c0_15] : memref<64x16xbf16, #tpu.memory_space<vmem>>, vector<64x16xbf16>
    %cst_16 = arith.constant dense<0.000000e+00> : vector<8x16xf32>
    %21 = tpu.matmul %19, %20, %cst_16 {dimension_numbers = #tpu.dot_dimension_numbers<[1], [0], [0], [1], [0, 0, 1, 1], [], []>} : vector<8x64xbf16>, vector<64x16xbf16>, vector<8x16xf32> -> vector<8x16xf32>
    %c0_17 = arith.constant 0 : index
    %c0_18 = arith.constant 0 : index
    %22 = vector.load %arg8[%c0_17, %c0_18] : memref<1x16xf32, #tpu.memory_space<vmem>>, vector<1x16xf32>
    %23 = vector.broadcast %22 : vector<1x16xf32> to vector<8x16xf32>
    %24 = arith.addf %21, %23 : vector<8x16xf32>
    %cst_19 = arith.constant 0.000000e+00 : f32
    %25 = vector.broadcast %cst_19 : f32 to vector<8x16xf32>
    %26 = arith.maximumf %24, %25 : vector<8x16xf32>
    %27 = arith.truncf %26 : vector<8x16xf32> to vector<8x16xbf16>
    %c0_20 = arith.constant 0 : index
    %c0_21 = arith.constant 0 : index
    %28 = vector.load %arg9[%c0_20, %c0_21] : memref<8x64xbf16, #tpu.memory_space<vmem>>, vector<8x64xbf16>
    %cst_22 = arith.constant dense<0.000000e+00> : vector<8x64xf32>
    %29 = tpu.matmul %3, %28, %cst_22 {dimension_numbers = #tpu.dot_dimension_numbers<[1], [0], [0], [1], [0, 0, 1, 1], [], []>} : vector<8x8xbf16>, vector<8x64xbf16>, vector<8x64xf32> -> vector<8x64xf32>
    %c0_23 = arith.constant 0 : index
    %c0_24 = arith.constant 0 : index
    %30 = vector.load %arg10[%c0_23, %c0_24] : memref<1x64xf32, #tpu.memory_space<vmem>>, vector<1x64xf32>
    %31 = vector.broadcast %30 : vector<1x64xf32> to vector<8x64xf32>
    %32 = arith.addf %29, %31 : vector<8x64xf32>
    %cst_25 = arith.constant 0.000000e+00 : f32
    %33 = vector.broadcast %cst_25 : f32 to vector<8x64xf32>
    %34 = arith.maximumf %32, %33 : vector<8x64xf32>
    %35 = arith.truncf %34 : vector<8x64xf32> to vector<8x64xbf16>
    %c0_26 = arith.constant 0 : index
    %c0_27 = arith.constant 0 : index
    %36 = vector.load %arg11[%c0_26, %c0_27] : memref<64x16xbf16, #tpu.memory_space<vmem>>, vector<64x16xbf16>
    %cst_28 = arith.constant dense<0.000000e+00> : vector<8x16xf32>
    %37 = tpu.matmul %35, %36, %cst_28 {dimension_numbers = #tpu.dot_dimension_numbers<[1], [0], [0], [1], [0, 0, 1, 1], [], []>} : vector<8x64xbf16>, vector<64x16xbf16>, vector<8x16xf32> -> vector<8x16xf32>
    %c0_29 = arith.constant 0 : index
    %c0_30 = arith.constant 0 : index
    %38 = vector.load %arg12[%c0_29, %c0_30] : memref<1x16xf32, #tpu.memory_space<vmem>>, vector<1x16xf32>
    %39 = vector.broadcast %38 : vector<1x16xf32> to vector<8x16xf32>
    %40 = arith.addf %37, %39 : vector<8x16xf32>
    %cst_31 = arith.constant 0.000000e+00 : f32
    %41 = vector.broadcast %cst_31 : f32 to vector<8x16xf32>
    %42 = arith.maximumf %40, %41 : vector<8x16xf32>
    %43 = arith.truncf %42 : vector<8x16xf32> to vector<8x16xbf16>
    %c0_32 = arith.constant 0 : index
    %c0_33 = arith.constant 0 : index
    %44 = vector.load %arg13[%c0_32, %c0_33] : memref<16x1xbf16, #tpu.memory_space<vmem>>, vector<16x1xbf16>
    %cst_34 = arith.constant dense<0.000000e+00> : vector<8x1xf32>
    %45 = tpu.matmul %27, %44, %cst_34 {dimension_numbers = #tpu.dot_dimension_numbers<[1], [0], [0], [1], [0, 0, 1, 1], [], []>} : vector<8x16xbf16>, vector<16x1xbf16>, vector<8x1xf32> -> vector<8x1xf32>
    %c0_35 = arith.constant 0 : index
    %c0_36 = arith.constant 0 : index
    %46 = vector.load %arg14[%c0_35, %c0_36] : memref<16x1xbf16, #tpu.memory_space<vmem>>, vector<16x1xbf16>
    %cst_37 = arith.constant dense<0.000000e+00> : vector<8x1xf32>
    %47 = tpu.matmul %43, %46, %cst_37 {dimension_numbers = #tpu.dot_dimension_numbers<[1], [0], [0], [1], [0, 0, 1, 1], [], []>} : vector<8x16xbf16>, vector<16x1xbf16>, vector<8x1xf32> -> vector<8x1xf32>
    %48 = arith.addf %45, %47 : vector<8x1xf32>
    %c0_38 = arith.constant 0 : index
    %c0_39 = arith.constant 0 : index
    %49 = vector.load %arg15[%c0_38, %c0_39] : memref<1x1xf32, #tpu.memory_space<vmem>>, vector<1x1xf32>
    %50 = vector.broadcast %49 : vector<1x1xf32> to vector<8x1xf32>
    %51 = arith.addf %48, %50 : vector<8x1xf32>
    %cst_40 = arith.constant 0.000000e+00 : f32
    %52 = vector.broadcast %cst_40 : f32 to vector<8x1xf32>
    %53 = arith.subf %52, %51 : vector<8x1xf32>
    %54 = math.exp %53 : vector<8x1xf32>
    %cst_41 = arith.constant 1.000000e+00 : f32
    %55 = vector.broadcast %cst_41 : f32 to vector<8x1xf32>
    %56 = arith.addf %55, %54 : vector<8x1xf32>
    %57 = tpu.reciprocal %56 {approx = true} : vector<8x1xf32> -> vector<8x1xf32>
    %c0_42 = arith.constant 0 : index
    %c0_43 = arith.constant 0 : index
    %58 = vector.load %arg16[%c0_42, %c0_43] : memref<8x1xf32, #tpu.memory_space<vmem>>, vector<8x1xf32>
    tpu.vector_store %arg16[%c0_42, %c0_43], %57 {strides = array<i32>} : memref<8x1xf32, #tpu.memory_space<vmem>>, vector<8x1xf32>,
    return
  }
  func.func @transform_0(%arg0: i32) -> (i32, i32) {
    %c0_i32 = arith.constant 0 : i32
    %c0_i32_0 = arith.constant 0 : i32
    return %arg0, %c0_i32 : i32, i32
  }
  func.func @transform_1(%arg0: i32) -> (i32, i32) {
    %c0_i32 = arith.constant 0 : i32
    %c0_i32_0 = arith.constant 0 : i32
    return %arg0, %c0_i32 : i32, i32
  }
  func.func @transform_2(%arg0: i32) -> (i32, i32) {
    %c0_i32 = arith.constant 0 : i32
    %c0_i32_0 = arith.constant 0 : i32
    %c0_i32_1 = arith.constant 0 : i32
    return %c0_i32, %c0_i32_0 : i32, i32
  }
  func.func @transform_3(%arg0: i32) -> (i32, i32) {
    %c0_i32 = arith.constant 0 : i32
    %c0_i32_0 = arith.constant 0 : i32
    %c0_i32_1 = arith.constant 0 : i32
    return %c0_i32, %c0_i32_0 : i32, i32
  }
  func.func @transform_4(%arg0: i32) -> (i32, i32) {
    %c0_i32 = arith.constant 0 : i32
    %c0_i32_0 = arith.constant 0 : i32
    %c0_i32_1 = arith.constant 0 : i32
    return %c0_i32, %c0_i32_0 : i32, i32
  }
  func.func @transform_5(%arg0: i32) -> (i32, i32) {
    %c0_i32 = arith.constant 0 : i32
    %c0_i32_0 = arith.constant 0 : i32
    %c0_i32_1 = arith.constant 0 : i32
    return %c0_i32, %c0_i32_0 : i32, i32
  }
  func.func @transform_6(%arg0: i32) -> (i32, i32) {
    %c0_i32 = arith.constant 0 : i32
    %c0_i32_0 = arith.constant 0 : i32
    %c0_i32_1 = arith.constant 0 : i32
    return %c0_i32, %c0_i32_0 : i32, i32
  }
  func.func @transform_7(%arg0: i32) -> (i32, i32) {
    %c0_i32 = arith.constant 0 : i32
    %c0_i32_0 = arith.constant 0 : i32
    %c0_i32_1 = arith.constant 0 : i32
    return %c0_i32, %c0_i32_0 : i32, i32
  }
  func.func @transform_8(%arg0: i32) -> (i32, i32) {
    %c0_i32 = arith.constant 0 : i32
    %c0_i32_0 = arith.constant 0 : i32
    %c0_i32_1 = arith.constant 0 : i32
    return %c0_i32, %c0_i32_0 : i32, i32
  }
  func.func @transform_9(%arg0: i32) -> (i32, i32) {
    %c0_i32 = arith.constant 0 : i32
    %c0_i32_0 = arith.constant 0 : i32
    %c0_i32_1 = arith.constant 0 : i32
    return %c0_i32, %c0_i32_0 : i32, i32
  }
  func.func @transform_10(%arg0: i32) -> (i32, i32) {
    %c0_i32 = arith.constant 0 : i32
    %c0_i32_0 = arith.constant 0 : i32
    %c0_i32_1 = arith.constant 0 : i32
    return %c0_i32, %c0_i32_0 : i32, i32
  }
  func.func @transform_11(%arg0: i32) -> (i32, i32) {
    %c0_i32 = arith.constant 0 : i32
    %c0_i32_0 = arith.constant 0 : i32
    %c0_i32_1 = arith.constant 0 : i32
    return %c0_i32, %c0_i32_0 : i32, i32
  }
  func.func @transform_12(%arg0: i32) -> (i32, i32) {
    %c0_i32 = arith.constant 0 : i32
    %c0_i32_0 = arith.constant 0 : i32
    %c0_i32_1 = arith.constant 0 : i32
    return %c0_i32, %c0_i32_0 : i32, i32
  }
  func.func @transform_13(%arg0: i32) -> (i32, i32) {
    %c0_i32 = arith.constant 0 : i32
    %c0_i32_0 = arith.constant 0 : i32
    %c0_i32_1 = arith.constant 0 : i32
    return %c0_i32, %c0_i32_0 : i32, i32
  }
  func.func @transform_14(%arg0: i32) -> (i32, i32) {
    %c0_i32 = arith.constant 0 : i32
    %c0_i32_0 = arith.constant 0 : i32
    %c0_i32_1 = arith.constant 0 : i32
    return %c0_i32, %c0_i32_0 : i32, i32
  }
  func.func @transform_15(%arg0: i32) -> (i32, i32) {
    %c0_i32 = arith.constant 0 : i32
    %c0_i32_0 = arith.constant 0 : i32
    return %arg0, %c0_i32 : i32, i32
  }
}

</mosaic_0001>

<llo_original>
// kernel: tpu_custom_call.1
$region0: #{tpu_custom_call.1}
  #allocation0 [shape = 'u32[]', space=smem, size = 0x4, offset = 0x4, fixed_abs, tag = 'smem constant byte address 0x4 - core index']
  #allocation1 [shape = 'u32[144,128]{1,0:T(1,128)}', space=vmem, size = 0x12000, scoped, tag = 'internal scratch']
  #allocation2 [shape = 'f32[1,1]{1,0:T(1,128)S(1)}', space=vmem, size = 0x200, scoped, tag = 'scoped memory for tpu_custom_call.1']
  %s0 = inlined_call_operand.vmem [shape: f32[8,32], index: 0, kind: input, shape index: {}]
  %s1 = inlined_call_operand.vmem [shape: f32[8,8], index: 1, kind: input, shape index: {}]
  %s2 = inlined_call_operand.vmem [shape: bf16[32,128], index: 2, kind: input, shape index: {}]
  %s3 = inlined_call_operand.vmem [shape: f32[1,128], index: 3, kind: input, shape index: {}]
  %s4 = inlined_call_operand.vmem [shape: bf16[128,64], index: 4, kind: input, shape index: {}]
  %s5 = inlined_call_operand.vmem [shape: f32[1,64], index: 5, kind: input, shape index: {}]
  %s6 = inlined_call_operand.vmem [shape: bf16[64,16], index: 6, kind: input, shape index: {}]
  %s7 = inlined_call_operand.vmem [shape: f32[1,16], index: 7, kind: input, shape index: {}]
  %s8 = inlined_call_operand.vmem [shape: bf16[8,64], index: 8, kind: input, shape index: {}]
  %s9 = inlined_call_operand.vmem [shape: f32[1,64], index: 9, kind: input, shape index: {}]
  %s10 = inlined_call_operand.vmem [shape: bf16[64,16], index: 10, kind: input, shape index: {}]
  %s11 = inlined_call_operand.vmem [shape: f32[1,16], index: 11, kind: input, shape index: {}]
  %s12 = inlined_call_operand.vmem [shape: bf16[16,1], index: 12, kind: input, shape index: {}]
  %s13 = inlined_call_operand.vmem [shape: bf16[16,1], index: 13, kind: input, shape index: {}]
  %s14 = inlined_call_operand.<no memory space> [shape: f32[1,1], index: 14, kind: input, shape index: {}]
  %s15 = inlined_call_operand.vmem [shape: f32[8,1], index: 15, kind: output, shape index: {}]
  %s16 = sld [smem:[#allocation0]]
  $region70: #{tpu_custom_call.1} parent=0
    _
  %s18 = ssub.s32 1, %s16
  %s19 = scalar_select 0, %s18, %s16
  %v20 = vstv %s14
  %21 = vst [vmem:[#allocation2] sm:$0x1] %v20
  // Predicated region
  $region2: #{tpu_custom_call.1} parent=0 // pred_check
    _
  $region3: #{tpu_custom_call.1} parent=0 // pred_check_branch
    %23 = sbr.rel (0) target = $region5
  $region4: #{tpu_custom_call.1} parent=0 // pred_region
    _
  $region5: #{tpu_custom_call.1} parent=0 // pred_fallthru
    _
  // Predicated region
  $region6: #{tpu_custom_call.1} parent=0 // pred_check
    _
  $region7: #{tpu_custom_call.1} parent=0 // pred_check_branch
    %25 = sbr.rel (0) target = $region9
  $region8: #{tpu_custom_call.1} parent=0 // pred_region
    _
  $region9: #{tpu_custom_call.1} parent=0 // pred_fallthru
    _
  // Predicated region
  $region10: #{tpu_custom_call.1} parent=0 // pred_check
    _
  $region11: #{tpu_custom_call.1} parent=0 // pred_check_branch
    %27 = sbr.rel (0) target = $region13
  $region12: #{tpu_custom_call.1} parent=0 // pred_region
    _
  $region13: #{tpu_custom_call.1} parent=0 // pred_fallthru
    _
  // Predicated region
  $region14: #{tpu_custom_call.1} parent=0 // pred_check
    _
  $region15: #{tpu_custom_call.1} parent=0 // pred_check_branch
    %29 = sbr.rel (0) target = $region17
  $region16: #{tpu_custom_call.1} parent=0 // pred_region
    _
  $region17: #{tpu_custom_call.1} parent=0 // pred_fallthru
    _
  // Predicated region
  $region18: #{tpu_custom_call.1} parent=0 // pred_check
    _
  $region19: #{tpu_custom_call.1} parent=0 // pred_check_branch
    %31 = sbr.rel (0) target = $region21
  $region20: #{tpu_custom_call.1} parent=0 // pred_region
    _
  $region21: #{tpu_custom_call.1} parent=0 // pred_fallthru
    _
  // Predicated region
  $region22: #{tpu_custom_call.1} parent=0 // pred_check
    _
  $region23: #{tpu_custom_call.1} parent=0 // pred_check_branch
    %33 = sbr.rel (0) target = $region25
  $region24: #{tpu_custom_call.1} parent=0 // pred_region
    _
  $region25: #{tpu_custom_call.1} parent=0 // pred_fallthru
    _
  // Predicated region
  $region26: #{tpu_custom_call.1} parent=0 // pred_check
    _
  $region27: #{tpu_custom_call.1} parent=0 // pred_check_branch
    %35 = sbr.rel (0) target = $region29
  $region28: #{tpu_custom_call.1} parent=0 // pred_region
    _
  $region29: #{tpu_custom_call.1} parent=0 // pred_fallthru
    _
  // Predicated region
  $region30: #{tpu_custom_call.1} parent=0 // pred_check
    _
  $region31: #{tpu_custom_call.1} parent=0 // pred_check_branch
    %37 = sbr.rel (0) target = $region33
  $region32: #{tpu_custom_call.1} parent=0 // pred_region
    _
  $region33: #{tpu_custom_call.1} parent=0 // pred_fallthru
    _
  // Predicated region
  $region34: #{tpu_custom_call.1} parent=0 // pred_check
    _
  $region35: #{tpu_custom_call.1} parent=0 // pred_check_branch
    %39 = sbr.rel (0) target = $region37
  $region36: #{tpu_custom_call.1} parent=0 // pred_region
    _
  $region37: #{tpu_custom_call.1} parent=0 // pred_fallthru
    _
  // Predicated region
  $region38: #{tpu_custom_call.1} parent=0 // pred_check
    _
  $region39: #{tpu_custom_call.1} parent=0 // pred_check_branch
    %41 = sbr.rel (0) target = $region41
  $region40: #{tpu_custom_call.1} parent=0 // pred_region
    _
  $region41: #{tpu_custom_call.1} parent=0 // pred_fallthru
    _
  // Predicated region
  $region42: #{tpu_custom_call.1} parent=0 // pred_check
    _
  $region43: #{tpu_custom_call.1} parent=0 // pred_check_branch
    %43 = sbr.rel (0) target = $region45
  $region44: #{tpu_custom_call.1} parent=0 // pred_region
    _
  $region45: #{tpu_custom_call.1} parent=0 // pred_fallthru
    _
  // Predicated region
  $region46: #{tpu_custom_call.1} parent=0 // pred_check
    _
  $region47: #{tpu_custom_call.1} parent=0 // pred_check_branch
    %45 = sbr.rel (0) target = $region49
  $region48: #{tpu_custom_call.1} parent=0 // pred_region
    _
  $region49: #{tpu_custom_call.1} parent=0 // pred_fallthru
    _
  // Predicated region
  $region50: #{tpu_custom_call.1} parent=0 // pred_check
    _
  $region51: #{tpu_custom_call.1} parent=0 // pred_check_branch
    %47 = sbr.rel (0) target = $region53
  $region52: #{tpu_custom_call.1} parent=0 // pred_region
    _
  $region53: #{tpu_custom_call.1} parent=0 // pred_fallthru
    _
  // Predicated region
  $region54: #{tpu_custom_call.1} parent=0 // pred_check
    _
  $region55: #{tpu_custom_call.1} parent=0 // pred_check_branch
    %49 = sbr.rel (0) target = $region57
  $region56: #{tpu_custom_call.1} parent=0 // pred_region
    _
  $region57: #{tpu_custom_call.1} parent=0 // pred_fallthru
    _
  // Predicated region
  $region58: #{tpu_custom_call.1} parent=0 // pred_check
    _
  $region59: #{tpu_custom_call.1} parent=0 // pred_check_branch
    %51 = sbr.rel (0) target = $region61
  $region60: #{tpu_custom_call.1} parent=0 // pred_region
    _
  $region61: #{tpu_custom_call.1} parent=0 // pred_fallthru
    _
  %v53 = vld [vmem:[%s0] sm:$0xff]
  %v54 = vpack.c.bf16 %v53, %v53
  %v55 = vld [vmem:[%s1] sm:$0xff]
  %v56 = vpack.c.bf16 %v55, %v55
  %v57 = vld [vmem:[%s2] sm:$0xf]
  %v58 = vld [vmem:[%s2 + $0x4] sm:$0xf]
  %v59 = vld [vmem:[%s2 + $0x8] sm:$0xf]
  %v60 = vld [vmem:[%s2 + $0xc] sm:$0xf]
  %v61 = vld [vmem:[%s3] sm:$0x1]
  %v63 = vlaneseq
  %v64 = vshrl.u32 %v63, 7
  %v65 = vsub.s32 0, %v64
  %v66 = vrot.slane %v61, %v65
  %v72 = vunpack.c.l.b16 %v57
  %v73 = vunpack.c.l.b16 %v58
  %v74 = vunpack.c.l.b16 %v59
  %v75 = vunpack.c.l.b16 %v60
  %v76 = vpack.c.b16 %v73, %v72
  %v77 = vpack.c.b16 %v75, %v74
  %vm80 = vcmask 261120
  %v82 = vsel %vm80, %v54, 0
  %84 = vmatprep.subr.bf16.mxu0 0
  %85 = vmatpush1.bf16.msra.mxu0 %v76
  %86 = vmatprep.subr.bf16.mxu0 0
  %87 = vmatpush1.bf16.msra.mxu0 %v77
  %88 = vmatprep.subr.bf16.mxu0 0
  %89 = vmatpush1.bf16.msra.mxu0 0
  %90 = vmatprep.subr.bf16.mxu0 0
  %91 = vmatpush1.bf16.msra.mxu0 0
  %92 = vmatprep.subr.bf16.mxu0 0
  %93 = vmatpush1.bf16.msra.mxu0 0
  %94 = vmatprep.subr.bf16.mxu0 0
  %95 = vmatpush1.bf16.msra.mxu0 0
  %96 = vmatprep.subr.bf16.mxu0 0
  %97 = vmatpush1.bf16.msra.mxu0 0
  %98 = vmatprep.subr.bf16.mxu0 0
  %99 = vmatpush1.bf16.msra.mxu0 0
  %100 = vmatprep.subr.bf16.mxu0 0
  %101 = vmatpush1.bf16.msra.mxu0 0
  %102 = vmatprep.subr.bf16.mxu0 0
  %103 = vmatpush1.bf16.msra.mxu0 0
  %104 = vmatprep.subr.bf16.mxu0 0
  %105 = vmatpush1.bf16.msra.mxu0 0
  %106 = vmatprep.subr.bf16.mxu0 0
  %107 = vmatpush1.bf16.msra.mxu0 0
  %108 = vmatprep.subr.bf16.mxu0 0
  %109 = vmatpush1.bf16.msra.mxu0 0
  %110 = vmatprep.subr.bf16.mxu0 0
  %111 = vmatpush1.bf16.msra.mxu0 0
  %112 = vmatprep.subr.bf16.mxu0 0
  %113 = vmatpush1.bf16.msra.mxu0 0
  %114 = vmatprep.subr.bf16.mxu0 0
  %115 = vmatpush1.bf16.msra.mxu0 0
  %116 = vmatprep.mubr.bf16.mxu0 0
  %117 = vmatmul.mubr.bf16.gmra.mrb[0].mxu0 %v82
  %v118 = vpop.f32.mrb[0].mxu0
  %v119 = vadd.f32 %v66, %v118
  %v120 = vpop.f32.mrb[0].mxu0
  %v121 = vpop.f32.mrb[0].mxu0
  %v122 = vpop.f32.mrb[0].mxu0
  %123 = vdwg.mxu0
  %v124 = vmax.f32 %v119, 0.0
  %v125 = vpack.c.bf16 %v124, %v124
  %v126 = vld [vmem:[%s4] sm:$0xf]
  %v127 = vld [vmem:[%s4 + $0x4] sm:$0xf]
  %v128 = vld [vmem:[%s4 + $0x8] sm:$0xf]
  %v129 = vld [vmem:[%s4 + $0xc] sm:$0xf]
  %v130 = vld [vmem:[%s4 + $0x10] sm:$0xf]
  %v131 = vld [vmem:[%s4 + $0x14] sm:$0xf]
  %v132 = vld [vmem:[%s4 + $0x18] sm:$0xf]
  %v133 = vld [vmem:[%s4 + $0x1c] sm:$0xf]
  %v134 = vld [vmem:[%s4 + $0x20] sm:$0xf]
  %v135 = vld [vmem:[%s4 + $0x24] sm:$0xf]
  %v136 = vld [vmem:[%s4 + $0x28] sm:$0xf]
  %v137 = vld [vmem:[%s4 + $0x2c] sm:$0xf]
  %v138 = vld [vmem:[%s4 + $0x30] sm:$0xf]
  %v139 = vld [vmem:[%s4 + $0x34] sm:$0xf]
  %v140 = vld [vmem:[%s4 + $0x38] sm:$0xf]
  %v141 = vld [vmem:[%s4 + $0x3c] sm:$0xf]
  %v142 = vld [vmem:[%s5] sm:$0x1]
  %v144 = vlaneseq
  %v145 = vshrl.u32 %v144, 7
  %v146 = vsub.s32 0, %v145
  %v147 = vrot.slane %v142, %v146
  %v165 = vunpack.c.l.b16 %v126
  %v166 = vunpack.c.l.b16 %v127
  %v167 = vunpack.c.l.b16 %v128
  %v168 = vunpack.c.l.b16 %v129
  %v169 = vunpack.c.l.b16 %v130
  %v170 = vunpack.c.l.b16 %v131
  %v171 = vunpack.c.l.b16 %v132
  %v172 = vunpack.c.l.b16 %v133
  %v173 = vunpack.c.l.b16 %v134
  %v174 = vunpack.c.l.b16 %v135
  %v175 = vunpack.c.l.b16 %v136
  %v176 = vunpack.c.l.b16 %v137
  %v177 = vunpack.c.l.b16 %v138
  %v178 = vunpack.c.l.b16 %v139
  %v179 = vunpack.c.l.b16 %v140
  %v180 = vunpack.c.l.b16 %v141
  %v181 = vpack.c.b16 %v166, %v165
  %v182 = vpack.c.b16 %v168, %v167
  %v183 = vpack.c.b16 %v170, %v169
  %v184 = vpack.c.b16 %v172, %v171
  %v185 = vpack.c.b16 %v174, %v173
  %v186 = vpack.c.b16 %v176, %v175
  %v187 = vpack.c.b16 %v178, %v177
  %v188 = vpack.c.b16 %v180, %v179
  %197 = vmatprep.subr.bf16.mxu0 0
  %198 = vmatpush1.bf16.msra.mxu0 %v181
  %199 = vmatprep.subr.bf16.mxu0 0
  %200 = vmatpush1.bf16.msra.mxu0 %v182
  %201 = vmatprep.subr.bf16.mxu0 0
  %202 = vmatpush1.bf16.msra.mxu0 %v183
  %203 = vmatprep.subr.bf16.mxu0 0
  %204 = vmatpush1.bf16.msra.mxu0 %v184
  %205 = vmatprep.subr.bf16.mxu0 0
  %206 = vmatpush1.bf16.msra.mxu0 %v185
  %207 = vmatprep.subr.bf16.mxu0 0
  %208 = vmatpush1.bf16.msra.mxu0 %v186
  %209 = vmatprep.subr.bf16.mxu0 0
  %210 = vmatpush1.bf16.msra.mxu0 %v187
  %211 = vmatprep.subr.bf16.mxu0 0
  %212 = vmatpush1.bf16.msra.mxu0 %v188
  %213 = vmatprep.subr.bf16.mxu0 0
  %214 = vmatpush1.bf16.msra.mxu0 0
  %215 = vmatprep.subr.bf16.mxu0 0
  %216 = vmatpush1.bf16.msra.mxu0 0
  %217 = vmatprep.subr.bf16.mxu0 0
  %218 = vmatpush1.bf16.msra.mxu0 0
  %219 = vmatprep.subr.bf16.mxu0 0
  %220 = vmatpush1.bf16.msra.mxu0 0
  %221 = vmatprep.subr.bf16.mxu0 0
  %222 = vmatpush1.bf16.msra.mxu0 0
  %223 = vmatprep.subr.bf16.mxu0 0
  %224 = vmatpush1.bf16.msra.mxu0 0
  %225 = vmatprep.subr.bf16.mxu0 0
  %226 = vmatpush1.bf16.msra.mxu0 0
  %227 = vmatprep.subr.bf16.mxu0 0
  %228 = vmatpush1.bf16.msra.mxu0 0
  %229 = vmatprep.mubr.bf16.mxu0 0
  %230 = vmatmul.mubr.bf16.gmra.mrb[0].mxu0 %v125
  %v231 = vpop.f32.mrb[0].mxu0
  %v232 = vadd.f32 %v147, %v231
  %v233 = vpop.f32.mrb[0].mxu0
  %v234 = vpop.f32.mrb[0].mxu0
  %v235 = vpop.f32.mrb[0].mxu0
  %236 = vdwg.mxu0
  %v237 = vmax.f32 %v232, 0.0
  %v238 = vpack.c.bf16 %v237, %v237
  %v239 = vld [vmem:[%s6] sm:$0xf]
  %v240 = vld [vmem:[%s6 + $0x4] sm:$0xf]
  %v241 = vld [vmem:[%s6 + $0x8] sm:$0xf]
  %v242 = vld [vmem:[%s6 + $0xc] sm:$0xf]
  %v243 = vld [vmem:[%s6 + $0x10] sm:$0xf]
  %v244 = vld [vmem:[%s6 + $0x14] sm:$0xf]
  %v245 = vld [vmem:[%s6 + $0x18] sm:$0xf]
  %v246 = vld [vmem:[%s6 + $0x1c] sm:$0xf]
  %v247 = vld [vmem:[%s7] sm:$0x1]
  %v249 = vlaneseq
  %v250 = vshrl.u32 %v249, 7
  %v251 = vsub.s32 0, %v250
  %v252 = vrot.slane %v247, %v251
  %v262 = vunpack.c.l.b16 %v239
  %v263 = vunpack.c.l.b16 %v240
  %v264 = vunpack.c.l.b16 %v241
  %v265 = vunpack.c.l.b16 %v242
  %v266 = vunpack.c.l.b16 %v243
  %v267 = vunpack.c.l.b16 %v244
  %v268 = vunpack.c.l.b16 %v245
  %v269 = vunpack.c.l.b16 %v246
  %v270 = vpack.c.b16 %v263, %v262
  %v271 = vpack.c.b16 %v265, %v264
  %v272 = vpack.c.b16 %v267, %v266
  %v273 = vpack.c.b16 %v269, %v268
  %vm278 = vcmask 523264
  %v280 = vsel %vm278, %v238, 0
  %282 = vmatprep.subr.bf16.mxu0 0
  %283 = vmatpush1.bf16.msra.mxu0 %v270
  %284 = vmatprep.subr.bf16.mxu0 0
  %285 = vmatpush1.bf16.msra.mxu0 %v271
  %286 = vmatprep.subr.bf16.mxu0 0
  %287 = vmatpush1.bf16.msra.mxu0 %v272
  %288 = vmatprep.subr.bf16.mxu0 0
  %289 = vmatpush1.bf16.msra.mxu0 %v273
  %290 = vmatprep.subr.bf16.mxu0 0
  %291 = vmatpush1.bf16.msra.mxu0 0
  %292 = vmatprep.subr.bf16.mxu0 0
  %293 = vmatpush1.bf16.msra.mxu0 0
  %294 = vmatprep.subr.bf16.mxu0 0
  %295 = vmatpush1.bf16.msra.mxu0 0
  %296 = vmatprep.subr.bf16.mxu0 0
  %297 = vmatpush1.bf16.msra.mxu0 0
  %298 = vmatprep.subr.bf16.mxu0 0
  %299 = vmatpush1.bf16.msra.mxu0 0
  %300 = vmatprep.subr.bf16.mxu0 0
  %301 = vmatpush1.bf16.msra.mxu0 0
  %302 = vmatprep.subr.bf16.mxu0 0
  %303 = vmatpush1.bf16.msra.mxu0 0
  %304 = vmatprep.subr.bf16.mxu0 0
  %305 = vmatpush1.bf16.msra.mxu0 0
  %306 = vmatprep.subr.bf16.mxu0 0
  %307 = vmatpush1.bf16.msra.mxu0 0
  %308 = vmatprep.subr.bf16.mxu0 0
  %309 = vmatpush1.bf16.msra.mxu0 0
  %310 = vmatprep.subr.bf16.mxu0 0
  %311 = vmatpush1.bf16.msra.mxu0 0
  %312 = vmatprep.subr.bf16.mxu0 0
  %313 = vmatpush1.bf16.msra.mxu0 0
  %314 = vmatprep.mubr.bf16.mxu0 0
  %315 = vmatmul.mubr.bf16.gmra.mrb[0].mxu0 %v280
  %v316 = vpop.f32.mrb[0].mxu0
  %v317 = vadd.f32 %v252, %v316
  %v318 = vpop.f32.mrb[0].mxu0
  %v319 = vpop.f32.mrb[0].mxu0
  %v320 = vpop.f32.mrb[0].mxu0
  %321 = vdwg.mxu0
  %v322 = vmax.f32 %v317, 0.0
  %v323 = vpack.c.bf16 %v322, %v322
  %v324 = vld [vmem:[%s8] sm:$0xf]
  %v325 = vld [vmem:[%s9] sm:$0x1]
  %v327 = vlaneseq
  %v328 = vshrl.u32 %v327, 7
  %v329 = vsub.s32 0, %v328
  %v330 = vrot.slane %v325, %v329
  %vm332 = vcmask 64512
  %v334 = vsel %vm332, %v56, 0
  %vm336 = vcmask 1043456
  %v338 = vsel %vm336, %v324, 0
  %340 = vmatprep.subr.bf16.mxu0 0
  %341 = vmatpush1.bf16.msra.mxu0 %v338
  %342 = vmatprep.subr.bf16.mxu0 0
  %343 = vmatpush1.bf16.msra.mxu0 0
  %344 = vmatprep.subr.bf16.mxu0 0
  %345 = vmatpush1.bf16.msra.mxu0 0
  %346 = vmatprep.subr.bf16.mxu0 0
  %347 = vmatpush1.bf16.msra.mxu0 0
  %348 = vmatprep.subr.bf16.mxu0 0
  %349 = vmatpush1.bf16.msra.mxu0 0
  %350 = vmatprep.subr.bf16.mxu0 0
  %351 = vmatpush1.bf16.msra.mxu0 0
  %352 = vmatprep.subr.bf16.mxu0 0
  %353 = vmatpush1.bf16.msra.mxu0 0
  %354 = vmatprep.subr.bf16.mxu0 0
  %355 = vmatpush1.bf16.msra.mxu0 0
  %356 = vmatprep.subr.bf16.mxu0 0
  %357 = vmatpush1.bf16.msra.mxu0 0
  %358 = vmatprep.subr.bf16.mxu0 0
  %359 = vmatpush1.bf16.msra.mxu0 0
  %360 = vmatprep.subr.bf16.mxu0 0
  %361 = vmatpush1.bf16.msra.mxu0 0
  %362 = vmatprep.subr.bf16.mxu0 0
  %363 = vmatpush1.bf16.msra.mxu0 0
  %364 = vmatprep.subr.bf16.mxu0 0
  %365 = vmatpush1.bf16.msra.mxu0 0
  %366 = vmatprep.subr.bf16.mxu0 0
  %367 = vmatpush1.bf16.msra.mxu0 0
  %368 = vmatprep.subr.bf16.mxu0 0
  %369 = vmatpush1.bf16.msra.mxu0 0
  %370 = vmatprep.subr.bf16.mxu0 0
  %371 = vmatpush1.bf16.msra.mxu0 0
  %372 = vmatprep.mubr.bf16.mxu0 0
  %373 = vmatmul.mubr.bf16.gmra.mrb[0].mxu0 %v334
  %v374 = vpop.f32.mrb[0].mxu0
  %v375 = vadd.f32 %v330, %v374
  %v376 = vpop.f32.mrb[0].mxu0
  %v377 = vpop.f32.mrb[0].mxu0
  %v378 = vpop.f32.mrb[0].mxu0
  %379 = vdwg.mxu0
  %v380 = vmax.f32 %v375, 0.0
  %v381 = vpack.c.bf16 %v380, %v380
  %v382 = vld [vmem:[%s10] sm:$0xf]
  %v383 = vld [vmem:[%s10 + $0x4] sm:$0xf]
  %v384 = vld [vmem:[%s10 + $0x8] sm:$0xf]
  %v385 = vld [vmem:[%s10 + $0xc] sm:$0xf]
  %v386 = vld [vmem:[%s10 + $0x10] sm:$0xf]
  %v387 = vld [vmem:[%s10 + $0x14] sm:$0xf]
  %v388 = vld [vmem:[%s10 + $0x18] sm:$0xf]
  %v389 = vld [vmem:[%s10 + $0x1c] sm:$0xf]
  %v390 = vld [vmem:[%s11] sm:$0x1]
  %v392 = vlaneseq
  %v393 = vshrl.u32 %v392, 7
  %v394 = vsub.s32 0, %v393
  %v395 = vrot.slane %v390, %v394
  %v405 = vunpack.c.l.b16 %v382
  %v406 = vunpack.c.l.b16 %v383
  %v407 = vunpack.c.l.b16 %v384
  %v408 = vunpack.c.l.b16 %v385
  %v409 = vunpack.c.l.b16 %v386
  %v410 = vunpack.c.l.b16 %v387
  %v411 = vunpack.c.l.b16 %v388
  %v412 = vunpack.c.l.b16 %v389
  %v413 = vpack.c.b16 %v406, %v405
  %v414 = vpack.c.b16 %v408, %v407
  %v415 = vpack.c.b16 %v410, %v409
  %v416 = vpack.c.b16 %v412, %v411
  %v422 = vsel %vm278, %v381, 0
  %424 = vmatprep.subr.bf16.mxu0 0
  %425 = vmatpush1.bf16.msra.mxu0 %v413
  %426 = vmatprep.subr.bf16.mxu0 0
  %427 = vmatpush1.bf16.msra.mxu0 %v414
  %428 = vmatprep.subr.bf16.mxu0 0
  %429 = vmatpush1.bf16.msra.mxu0 %v415
  %430 = vmatprep.subr.bf16.mxu0 0
  %431 = vmatpush1.bf16.msra.mxu0 %v416
  %432 = vmatprep.subr.bf16.mxu0 0
  %433 = vmatpush1.bf16.msra.mxu0 0
  %434 = vmatprep.subr.bf16.mxu0 0
  %435 = vmatpush1.bf16.msra.mxu0 0
  %436 = vmatprep.subr.bf16.mxu0 0
  %437 = vmatpush1.bf16.msra.mxu0 0
  %438 = vmatprep.subr.bf16.mxu0 0
  %439 = vmatpush1.bf16.msra.mxu0 0
  %440 = vmatprep.subr.bf16.mxu0 0
  %441 = vmatpush1.bf16.msra.mxu0 0
  %442 = vmatprep.subr.bf16.mxu0 0
  %443 = vmatpush1.bf16.msra.mxu0 0
  %444 = vmatprep.subr.bf16.mxu0 0
  %445 = vmatpush1.bf16.msra.mxu0 0
  %446 = vmatprep.subr.bf16.mxu0 0
  %447 = vmatpush1.bf16.msra.mxu0 0
  %448 = vmatprep.subr.bf16.mxu0 0
  %449 = vmatpush1.bf16.msra.mxu0 0
  %450 = vmatprep.subr.bf16.mxu0 0
  %451 = vmatpush1.bf16.msra.mxu0 0
  %452 = vmatprep.subr.bf16.mxu0 0
  %453 = vmatpush1.bf16.msra.mxu0 0
  %454 = vmatprep.subr.bf16.mxu0 0
  %455 = vmatpush1.bf16.msra.mxu0 0
  %456 = vmatprep.mubr.bf16.mxu0 0
  %457 = vmatmul.mubr.bf16.gmra.mrb[0].mxu0 %v422
  %v458 = vpop.f32.mrb[0].mxu0
  %v459 = vadd.f32 %v395, %v458
  %v460 = vpop.f32.mrb[0].mxu0
  %v461 = vpop.f32.mrb[0].mxu0
  %v462 = vpop.f32.mrb[0].mxu0
  %463 = vdwg.mxu0
  %v464 = vmax.f32 %v459, 0.0
  %v465 = vpack.c.bf16 %v464, %v464
  %v466 = vld [vmem:[%s12] sm:$0xf]
  %v467 = vld [vmem:[%s12 + $0x4] sm:$0xf]
  %v468 = vld [vmem:[%s13] sm:$0xf]
  %v469 = vld [vmem:[%s13 + $0x4] sm:$0xf]
  %v472 = vunpack.c.l.b16 %v468
  %v473 = vunpack.c.l.b16 %v469
  %v474 = vpack.c.b16 %v473, %v472
  %vm476 = vcmask 130048
  %v478 = vsel %vm476, %v465, 0
  %480 = vmatprep.subr.bf16.mxu0 0
  %481 = vmatpush1.bf16.msra.mxu0 %v474
  %482 = vmatprep.subr.bf16.mxu0 0
  %483 = vmatpush1.bf16.msra.mxu0 0
  %484 = vmatprep.subr.bf16.mxu0 0
  %485 = vmatpush1.bf16.msra.mxu0 0
  %486 = vmatprep.subr.bf16.mxu0 0
  %487 = vmatpush1.bf16.msra.mxu0 0
  %488 = vmatprep.subr.bf16.mxu0 0
  %489 = vmatpush1.bf16.msra.mxu0 0
  %490 = vmatprep.subr.bf16.mxu0 0
  %491 = vmatpush1.bf16.msra.mxu0 0
  %492 = vmatprep.subr.bf16.mxu0 0
  %493 = vmatpush1.bf16.msra.mxu0 0
  %494 = vmatprep.subr.bf16.mxu0 0
  %495 = vmatpush1.bf16.msra.mxu0 0
  %496 = vmatprep.subr.bf16.mxu0 0
  %497 = vmatpush1.bf16.msra.mxu0 0
  %498 = vmatprep.subr.bf16.mxu0 0
  %499 = vmatpush1.bf16.msra.mxu0 0
  %500 = vmatprep.subr.bf16.mxu0 0
  %501 = vmatpush1.bf16.msra.mxu0 0
  %502 = vmatprep.subr.bf16.mxu0 0
  %503 = vmatpush1.bf16.msra.mxu0 0
  %504 = vmatprep.subr.bf16.mxu0 0
  %505 = vmatpush1.bf16.msra.mxu0 0
  %506 = vmatprep.subr.bf16.mxu0 0
  %507 = vmatpush1.bf16.msra.mxu0 0
  %508 = vmatprep.subr.bf16.mxu0 0
  %509 = vmatpush1.bf16.msra.mxu0 0
  %510 = vmatprep.subr.bf16.mxu0 0
  %511 = vmatpush1.bf16.msra.mxu0 0
  %512 = vmatprep.mubr.bf16.mxu0 0
  %513 = vmatmul.mubr.bf16.gmra.mrb[0].mxu0 %v478
  %v514 = vpop.f32.mrb[0].mxu0
  %v515 = vadd.f32 0.0, %v514
  %v516 = vpop.f32.mrb[0].mxu0
  %v517 = vpop.f32.mrb[0].mxu0
  %v518 = vpop.f32.mrb[0].mxu0
  %519 = vdwg.mxu0
  %v522 = vunpack.c.l.b16 %v466
  %v523 = vunpack.c.l.b16 %v467
  %v524 = vpack.c.b16 %v523, %v522
  %v527 = vsel %vm476, %v323, 0
  %529 = vmatprep.subr.bf16.mxu0 0
  %530 = vmatpush1.bf16.msra.mxu0 %v524
  %531 = vmatprep.subr.bf16.mxu0 0
  %532 = vmatpush1.bf16.msra.mxu0 0
  %533 = vmatprep.subr.bf16.mxu0 0
  %534 = vmatpush1.bf16.msra.mxu0 0
  %535 = vmatprep.subr.bf16.mxu0 0
  %536 = vmatpush1.bf16.msra.mxu0 0
  %537 = vmatprep.subr.bf16.mxu0 0
  %538 = vmatpush1.bf16.msra.mxu0 0
  %539 = vmatprep.subr.bf16.mxu0 0
  %540 = vmatpush1.bf16.msra.mxu0 0
  %541 = vmatprep.subr.bf16.mxu0 0
  %542 = vmatpush1.bf16.msra.mxu0 0
  %543 = vmatprep.subr.bf16.mxu0 0
  %544 = vmatpush1.bf16.msra.mxu0 0
  %545 = vmatprep.subr.bf16.mxu0 0
  %546 = vmatpush1.bf16.msra.mxu0 0
  %547 = vmatprep.subr.bf16.mxu0 0
  %548 = vmatpush1.bf16.msra.mxu0 0
  %549 = vmatprep.subr.bf16.mxu0 0
  %550 = vmatpush1.bf16.msra.mxu0 0
  %551 = vmatprep.subr.bf16.mxu0 0
  %552 = vmatpush1.bf16.msra.mxu0 0
  %553 = vmatprep.subr.bf16.mxu0 0
  %554 = vmatpush1.bf16.msra.mxu0 0
  %555 = vmatprep.subr.bf16.mxu0 0
  %556 = vmatpush1.bf16.msra.mxu0 0
  %557 = vmatprep.subr.bf16.mxu0 0
  %558 = vmatpush1.bf16.msra.mxu0 0
  %559 = vmatprep.subr.bf16.mxu0 0
  %560 = vmatpush1.bf16.msra.mxu0 0
  %561 = vmatprep.mubr.bf16.mxu0 0
  %562 = vmatmul.mubr.bf16.gmra.mrb[0].mxu0 %v527
  %v563 = vpop.f32.mrb[0].mxu0
  %v564 = vadd.f32 %v515, %v563
  %v565 = vpop.f32.mrb[0].mxu0
  %v566 = vpop.f32.mrb[0].mxu0
  %v567 = vpop.f32.mrb[0].mxu0
  %568 = vdwg.mxu0
  %v569 = vld [vmem:[#allocation2] sm:$0x1]
  %v571 = vlaneseq
  %v572 = vshrl.u32 %v571, 7
  %v573 = vsub.s32 0, %v572
  %v574 = vrot.slane %v569, %v573
  %v576 = vadd.f32 %v564, %v574
  %v577 = vsub.f32 0.0, %v576
  %v578 = vmul.f32 %v577, 1.442695
  %v579 = vpow.pop %v578
  %v580 = vadd.f32 %v579, 1.0
  %v581 = vrcp.pop %v580
  %vm582 = vcmask 7168
  %583 = vst.msk [vmem:[%s15] sm:$0xff] %vm582, %v581
  // Predicated region
  $region62: #{tpu_custom_call.1} parent=0 // pred_check
    _
  $region63: #{tpu_custom_call.1} parent=0 // pred_check_branch
    %585 = sbr.rel (0) target = $region65
  $region64: #{tpu_custom_call.1} parent=0 // pred_region
    _
  $region65: #{tpu_custom_call.1} parent=0 // pred_fallthru
    _
  // Predicated region
  $region66: #{tpu_custom_call.1} parent=0 // pred_check
    _
  $region67: #{tpu_custom_call.1} parent=0 // pred_check_branch
    %587 = sbr.rel (0) target = $region69
  $region68: #{tpu_custom_call.1} parent=0 // pred_region
    _
  $region69: #{tpu_custom_call.1} parent=0 // pred_fallthru
    _

</llo_original>
